<compile_context>
chip_gen: v5e
topology: v5e:2x2
jax: 0.10.0
libtpu: 0.0.40
codegen_flags: <defaults>
</compile_context>

<pallas_src>
import functools

import jax
import jax.numpy as jnp
from jax.experimental import pallas as pl
from jax.experimental.pallas import tpu as pltpu


def iou_loss_kernel(m_ref, pred_ref, true_ref, out_ref):
    c = pl.program_id(0)              # parallel split (both TCs on v7x)
    s = pl.program_id(1)              # streamed reduction step
    n_s = pl.num_programs(1)

    @pl.when(s == 0)
    def _init():
        out_ref[...] = jnp.zeros_like(out_ref)

    tr = pred_ref.shape[0]            # rows in this tile (static, multiple of 8)
    p = pred_ref[...]
    t = true_ref[...]

    # Lane-interleaved layout: lane l of a row holds coordinate (l % 4) of box
    # (row * 32 + l // 4).  De-interleave with XLU rolls; every per-box result
    # lands on the lane with l % 4 == 0.
    lane = jax.lax.broadcasted_iota(jnp.int32, (tr, 128), 1)
    row = jax.lax.broadcasted_iota(jnp.int32, (tr, 128), 0)
    coord = lane & 3                  # 0:x1  1:y1  2:x2  3:y2

    # max(pred, true) on the x1/y1 lanes, min(pred, true) on the x2/y2 lanes.
    corner = jnp.where(coord < 2, jnp.maximum(p, t), jnp.minimum(p, t))

    # pltpu.roll follows jnp.roll semantics: shift 126 == -2 (lane l reads lane
    # l+2), shift 127 == -1 (lane l reads lane l+1).
    d = jnp.maximum(pltpu.roll(corner, 126, axis=1) - corner, 0.0)  # l%4==0: w, 1: h
    inter = d * pltpu.roll(d, 127, axis=1)                          # l%4==0: w*h

    dp = pltpu.roll(p, 126, axis=1) - p
    area_p = dp * pltpu.roll(dp, 127, axis=1)                       # l%4==0: pred area
    dt = pltpu.roll(t, 126, axis=1) - t
    area_t = dt * pltpu.roll(dt, 127, axis=1)                       # l%4==0: true area

    union = area_p + area_t - inter
    # Degenerate pairs have inter == 0, so union -> 1 gives IoU exactly 0
    # (no 0/0 NaN); garbage in padded / out-of-bounds lanes is masked below.
    safe_union = jnp.where(union > 0.0, union, 1.0)
    iou = inter * pl.reciprocal(safe_union, approx=True)            # EUP vrcp

    # Keep one lane per box, and only boxes that really exist (prefetched M).
    # `blk` is the *logical* row-block; duplicated / out-of-range blocks from
    # the clamped index_map land entirely in the masked region.
    blk = c * n_s + s
    box_idx = (blk * tr + row) * 32 + (lane >> 2)
    valid = (coord == 0) & (box_idx < m_ref[0])
    iou = jnp.where(valid, iou, 0.0)

    # Vector accumulate into the resident (8, 128) output block (pure VALU);
    # the single cross-lane reduce + divide happen on the tiny result outside.
    out_ref[...] += iou.reshape(tr // 8, 8, 128).sum(axis=0)


@functools.partial(jax.jit, static_argnames="tile_rows")
def iou_loss(pred_boxes, true_boxes, *, tile_rows=None):
    p = jnp.asarray(pred_boxes).reshape(-1, 4).astype(jnp.float32)
    t = jnp.asarray(true_boxes).reshape(-1, 4).astype(jnp.float32)
    M = p.shape[0]
    if M == 0:
        return jnp.float32(jnp.nan)   # 1 - mean(<empty>) — matches torch

    # Row-tile height (multiple of 8 sublanes).  8192 rows = 4 MiB of f32 per
    # input per grid step -> 16 MiB double-buffered, under the 32 MiB limit.
    tr_cap = 8192 if tile_rows is None else max(8, (int(tile_rows) // 8) * 8)

    # The (M, 4) buffer is *viewed* as (R, 128): 32 boxes per 128-lane row.
    # If everything fits in a single row-block, align to whole (8, 128) tiles
    # (256 boxes); otherwise only 32-box (one-row) alignment is needed and the
    # ragged tail block is masked in-kernel.
    align = 256 if pl.cdiv(M, 32) <= tr_cap else 32
    Mp = ((M + align - 1) // align) * align
    if Mp != M:
        # TODO(synk): this pad is one extra HBM pass over the inputs; a
        # producer emitting an `align`-box-aligned buffer makes it zero-copy.
        p = jnp.pad(p, ((0, Mp - M), (0, 0)))
        t = jnp.pad(t, ((0, Mp - M), (0, 0)))
    R = Mp // 32
    pI = p.reshape(R, 128)            # free: contiguous row-major reinterpret
    tI = t.reshape(R, 128)

    TR = R if R <= tr_cap else tr_cap
    n_blocks = pl.cdiv(R, TR)         # total row-blocks
    n_steps = pl.cdiv(n_blocks, 2)    # per-core "arbitrary" steps

    def in_map(c, s, m):              # clamp: extra (c, s) pairs re-read the last
        blk = jnp.minimum(c * n_steps + s, n_blocks - 1)    # block; fully masked
        return (blk, 0)                                     # in-kernel

    in_spec = pl.BlockSpec((TR, 128), in_map)
    m_arr = jnp.array([M], jnp.int32)  # scalar-prefetched box count (SMEM)

    cost = pl.CostEstimate(
        flops=int(20 * R * 128),
        transcendentals=int(R * 128),
        bytes_accessed=int(2 * R * 128 * 4 + 16 * 128 * 4 + 4),
    )

    partials = pl.pallas_call(
        iou_loss_kernel,
        out_shape=jax.ShapeDtypeStruct((2 * 8, 128), jnp.float32),
        grid_spec=pltpu.PrefetchScalarGridSpec(
            num_scalar_prefetch=1,
            grid=(2, n_steps),
            in_specs=[in_spec, in_spec],
            out_specs=pl.BlockSpec((8, 128), lambda c, s, m: (c, 0)),
        ),
        compiler_params=pltpu.CompilerParams(
            dimension_semantics=("parallel", "arbitrary"),
            vmem_limit_bytes=32 * 1024 * 1024,
        ),
        cost_estimate=cost,
    )(m_arr, pI, tI)

    # Tiny finalize on the (16, 128) per-core partials.
    return 1.0 - partials.sum() / jnp.float32(M)


def _iou_loss_ref(pred_boxes, true_boxes):
    """Pure-JAX reference for sanity checking."""
    p = jnp.asarray(pred_boxes).reshape(-1, 4).astype(jnp.float32)
    t = jnp.asarray(true_boxes).reshape(-1, 4).astype(jnp.float32)
    x_left = jnp.maximum(p[:, 0], t[:, 0])
    y_top = jnp.maximum(p[:, 1], t[:, 1])
    x_right = jnp.minimum(p[:, 2], t[:, 2])
    y_bottom = jnp.minimum(p[:, 3], t[:, 3])
    w = x_right - x_left
    h = y_bottom - y_top
    inter = w * h
    area_p = (p[:, 2] - p[:, 0]) * (p[:, 3] - p[:, 1])
    area_t = (t[:, 2] - t[:, 0]) * (t[:, 3] - t[:, 1])
    union = area_p + area_t - inter
    iou = jnp.where((w >= 0) & (h >= 0), inter / union, 0.0)
    return 1.0 - jnp.mean(iou)


if __name__ == "__main__":
    key = jax.random.PRNGKey(0)

    def make_boxes(k, b, n):
        k1, k2 = jax.random.split(k)
        xy = jax.random.uniform(k1, (b, n, 2), minval=0.0, maxval=8.0)
        wh = jax.random.uniform(k2, (b, n, 2), minval=1.0, maxval=6.0)
        return jnp.concatenate([xy, xy + wh], axis=-1)   # valid [x1, y1, x2, y2]

    cases = [
        dict(b=2, n=128, tile_rows=None),  # 256 boxes: aligned, zero-copy view
        dict(b=2, n=8, tile_rows=None),    # 16 boxes: padded + masked tail
        dict(b=4, n=512, tile_rows=8),     # 2048 boxes: multi-step grid + 2-way split
    ]
    for case in cases:
        key, kp, kt = jax.random.split(key, 3)
        pred = make_boxes(kp, case["b"], case["n"])
        true = make_boxes(kt, case["b"], case["n"])
        loss = jax.block_until_ready(
            iou_loss(pred, true, tile_rows=case["tile_rows"]))
        ref = jax.block_until_ready(_iou_loss_ref(pred, true))
        # approx reciprocal (EUP vrcp) has ~2^-12 relative error
        assert jnp.allclose(loss, ref, atol=2e-3, rtol=2e-3), (case, loss, ref)

    print("KERNEL_OK")
</pallas_src>

<mosaic_0001>
module attributes {stable_mosaic.version = 11 : i64} {
  func.func @iou_loss_kernel(%arg0: i32, %arg1: i32, %arg2: memref<1xi32, #tpu.memory_space<smem>>, %arg3: memref<8x128xf32, #tpu.memory_space<vmem>>, %arg4: memref<8x128xf32, #tpu.memory_space<vmem>>, %arg5: memref<8x128xf32, #tpu.memory_space<vmem>>) attributes {dimension_semantics = [#tpu.dimension_semantics<parallel>, #tpu.dimension_semantics<arbitrary>], iteration_bounds = array<i64: 2, 1>, scalar_prefetch = 1 : i64, scratch_operands = 0 : i64, tpu.core_type = #tpu.core_type<tc>, window_params = [{transform_indices = @transform_0, window_bounds = array<i64: 8, 128>}, {transform_indices = @transform_1, window_bounds = array<i64: 8, 128>}, {transform_indices = @transform_2, window_bounds = array<i64: 8, 128>}]} {
    %c0_i32 = arith.constant 0 : i32
    %0 = arith.cmpi eq, %arg1, %c0_i32 : i32
    %1 = arith.extui %0 : i1 to i32
    %c0_i32_0 = arith.constant 0 : i32
    %2 = arith.cmpi ne, %1, %c0_i32_0 : i32
    scf.if %2 {
      %cst_19 = arith.constant 0.000000e+00 : f32
      %59 = vector.broadcast %cst_19 : f32 to vector<8x128xf32>
      %c0_20 = arith.constant 0 : index
      %c0_21 = arith.constant 0 : index
      %60 = vector.load %arg5[%c0_20, %c0_21] : memref<8x128xf32, #tpu.memory_space<vmem>>, vector<8x128xf32>
      tpu.vector_store %arg5[%c0_20, %c0_21], %59 {strides = array<i32>} : memref<8x128xf32, #tpu.memory_space<vmem>>, vector<8x128xf32>,
    } else {
    }
    %c0 = arith.constant 0 : index
    %c0_1 = arith.constant 0 : index
    %3 = vector.load %arg3[%c0, %c0_1] : memref<8x128xf32, #tpu.memory_space<vmem>>, vector<8x128xf32>
    %c0_2 = arith.constant 0 : index
    %c0_3 = arith.constant 0 : index
    %4 = vector.load %arg4[%c0_2, %c0_3] : memref<8x128xf32, #tpu.memory_space<vmem>>, vector<8x128xf32>
    %5 = tpu.iota {dimensions = array<i32: 1>} : vector<8x128xi32>
    %6 = tpu.iota {dimensions = array<i32: 0>} : vector<8x128xi32>
    %c3_i32 = arith.constant 3 : i32
    %7 = vector.broadcast %c3_i32 : i32 to vector<8x128xi32>
    %8 = arith.andi %5, %7 : vector<8x128xi32>
    %c2_i32 = arith.constant 2 : i32
    %9 = vector.broadcast %c2_i32 : i32 to vector<8x128xi32>
    %10 = arith.cmpi slt, %8, %9 : vector<8x128xi32>
    %11 = arith.maximumf %3, %4 : vector<8x128xf32>
    %12 = arith.minimumf %3, %4 : vector<8x128xf32>
    %13 = arith.select %10, %11, %12 : vector<8x128xi1>, vector<8x128xf32>
    %c126_i32 = arith.constant 126 : i32
    %14 = tpu.dynamic_rotate %13 by %c126_i32 dim 1 : vector<8x128xf32>, i32 -> vector<8x128xf32>
    %15 = arith.subf %14, %13 : vector<8x128xf32>
    %cst = arith.constant 0.000000e+00 : f32
    %16 = vector.broadcast %cst : f32 to vector<8x128xf32>
    %17 = arith.maximumf %15, %16 : vector<8x128xf32>
    %c127_i32 = arith.constant 127 : i32
    %18 = tpu.dynamic_rotate %17 by %c127_i32 dim 1 : vector<8x128xf32>, i32 -> vector<8x128xf32>
    %19 = arith.mulf %17, %18 : vector<8x128xf32>
    %c126_i32_4 = arith.constant 126 : i32
    %20 = tpu.dynamic_rotate %3 by %c126_i32_4 dim 1 : vector<8x128xf32>, i32 -> vector<8x128xf32>
    %21 = arith.subf %20, %3 : vector<8x128xf32>
    %c127_i32_5 = arith.constant 127 : i32
    %22 = tpu.dynamic_rotate %21 by %c127_i32_5 dim 1 : vector<8x128xf32>, i32 -> vector<8x128xf32>
    %23 = arith.mulf %21, %22 : vector<8x128xf32>
    %c126_i32_6 = arith.constant 126 : i32
    %24 = tpu.dynamic_rotate %4 by %c126_i32_6 dim 1 : vector<8x128xf32>, i32 -> vector<8x128xf32>
    %25 = arith.subf %24, %4 : vector<8x128xf32>
    %c127_i32_7 = arith.constant 127 : i32
    %26 = tpu.dynamic_rotate %25 by %c127_i32_7 dim 1 : vector<8x128xf32>, i32 -> vector<8x128xf32>
    %27 = arith.mulf %25, %26 : vector<8x128xf32>
    %28 = arith.addf %23, %27 : vector<8x128xf32>
    %29 = arith.subf %28, %19 : vector<8x128xf32>
    %cst_8 = arith.constant 0.000000e+00 : f32
    %30 = vector.broadcast %cst_8 : f32 to vector<8x128xf32>
    %31 = arith.cmpf ogt, %29, %30 : vector<8x128xf32>
    %cst_9 = arith.constant 1.000000e+00 : f32
    %32 = vector.broadcast %cst_9 : f32 to vector<8x128xf32>
    %33 = arith.select %31, %29, %32 : vector<8x128xi1>, vector<8x128xf32>
    %34 = tpu.reciprocal %33 {approx = true} : vector<8x128xf32> -> vector<8x128xf32>
    %35 = arith.mulf %19, %34 : vector<8x128xf32>
    %c1_i32 = arith.constant 1 : i32
    %36 = arith.muli %arg0, %c1_i32 : i32
    %37 = arith.addi %36, %arg1 : i32
    %c8_i32 = arith.constant 8 : i32
    %38 = arith.muli %37, %c8_i32 : i32
    %39 = vector.broadcast %38 : i32 to vector<8x128xi32>
    %40 = arith.addi %39, %6 : vector<8x128xi32>
    %c32_i32 = arith.constant 32 : i32
    %41 = vector.broadcast %c32_i32 : i32 to vector<8x128xi32>
    %42 = arith.muli %40, %41 : vector<8x128xi32>
    %c2_i32_10 = arith.constant 2 : i32
    %43 = vector.broadcast %c2_i32_10 : i32 to vector<8x128xi32>
    %44 = arith.shrsi %5, %43 : vector<8x128xi32>
    %45 = arith.addi %42, %44 : vector<8x128xi32>
    %c0_i32_11 = arith.constant 0 : i32
    %46 = vector.broadcast %c0_i32_11 : i32 to vector<8x128xi32>
    %47 = arith.cmpi eq, %8, %46 : vector<8x128xi32>
    %c0_12 = arith.constant 0 : index
    %48 = memref.load %arg2[%c0_12] : memref<1xi32, #tpu.memory_space<smem>>
    %49 = vector.broadcast %48 : i32 to vector<8x128xi32>
    %50 = arith.cmpi slt, %45, %49 : vector<8x128xi32>
    %51 = arith.andi %47, %50 : vector<8x128xi1>
    %cst_13 = arith.constant 0.000000e+00 : f32
    %52 = vector.broadcast %cst_13 : f32 to vector<8x128xf32>
    %53 = arith.select %51, %35, %52 : vector<8x128xi1>, vector<8x128xf32>
    %c0_14 = arith.constant 0 : index
    %c0_15 = arith.constant 0 : index
    %54 = vector.load %arg5[%c0_14, %c0_15] : memref<8x128xf32, #tpu.memory_space<vmem>>, vector<8x128xf32>
    %55 = vector.shape_cast %53 : vector<8x128xf32> to vector<1x8x128xf32>
    %cst_16 = arith.constant dense<0.000000e+00> : vector<8x128xf32>
    %56 = vector.multi_reduction <add>, %55, %cst_16 [0] : vector<1x8x128xf32> to vector<8x128xf32>
    %57 = arith.addf %54, %56 : vector<8x128xf32>
    %c0_17 = arith.constant 0 : index
    %c0_18 = arith.constant 0 : index
    %58 = vector.load %arg5[%c0_17, %c0_18] : memref<8x128xf32, #tpu.memory_space<vmem>>, vector<8x128xf32>
    tpu.vector_store %arg5[%c0_17, %c0_18], %57 {strides = array<i32>} : memref<8x128xf32, #tpu.memory_space<vmem>>, vector<8x128xf32>,
    return
  }
  func.func @transform_0(%arg0: i32, %arg1: i32, %arg2: memref<1xi32, #tpu.memory_space<smem>>) -> (i32, i32) {
    %c1_i32 = arith.constant 1 : i32
    %0 = arith.muli %arg0, %c1_i32 : i32
    %1 = arith.addi %0, %arg1 : i32
    %c0_i32 = arith.constant 0 : i32
    %2 = arith.minsi %1, %c0_i32 : i32
    %c0_i32_0 = arith.constant 0 : i32
    %c0_i32_1 = arith.constant 0 : i32
    return %2, %c0_i32_0 : i32, i32
  }
  func.func @transform_1(%arg0: i32, %arg1: i32, %arg2: memref<1xi32, #tpu.memory_space<smem>>) -> (i32, i32) {
    %c1_i32 = arith.constant 1 : i32
    %0 = arith.muli %arg0, %c1_i32 : i32
    %1 = arith.addi %0, %arg1 : i32
    %c0_i32 = arith.constant 0 : i32
    %2 = arith.minsi %1, %c0_i32 : i32
    %c0_i32_0 = arith.constant 0 : i32
    %c0_i32_1 = arith.constant 0 : i32
    return %2, %c0_i32_0 : i32, i32
  }
  func.func @transform_2(%arg0: i32, %arg1: i32, %arg2: memref<1xi32, #tpu.memory_space<smem>>) -> (i32, i32) {
    %c0_i32 = arith.constant 0 : i32
    %c0_i32_0 = arith.constant 0 : i32
    return %arg0, %c0_i32 : i32, i32
  }
}

</mosaic_0001>

<llo_original>
// kernel: iou_loss.1
$region0: #{iou_loss.1}
  #allocation0 [shape = 'u32[]', space=smem, size = 0x4, offset = 0x4, fixed_abs, tag = 'smem constant byte address 0x4 - core index']
  #allocation1 [shape = 'u32[72,128]{1,0:T(1,128)}', space=vmem, size = 0x9000, scoped, tag = 'internal scratch']
  #allocation2 [shape = 's32[1]{0}', space=sflag, size = 0x4, scoped, tag = 'scoped memory for iou_loss.1']
  #allocation3 [shape = 's32[1]{0:T(128)S(6)}', space=smem, size = 0x200, scoped, tag = 'prefetched SMEM operand 0']
  %s0 = inlined_call_operand.<no memory space> [shape: s32[1], index: 0, kind: input, shape index: {}]
  %s1 = inlined_call_operand.vmem [shape: f32[8,128], index: 1, kind: input, shape index: {}]
  %s2 = inlined_call_operand.vmem [shape: f32[8,128], index: 2, kind: input, shape index: {}]
  %s3 = inlined_call_operand.vmem [shape: f32[16,128], index: 3, kind: output, shape index: {}]
  %s4 = sld [smem:[#allocation0]]
  $region45: #{iou_loss.1} parent=0
    _
  %s6 = ssub.s32 1, %s4
  %s7 = scalar_select 0, %s6, %s4
  %8 = sst [smem:[#allocation3]] %s0
  loop: start=0, step=1, limit=4
  $region2: #{iou_loss.1} parent=0 // loop_pre_header
    _
  $region3: #{iou_loss.1} parent=0 // loop_header
    %s10 = sphi 0, %s14
    %p11 = scmp.ge.s32.totalorder %s10, 4
    %s17 = sphi 0, %s29
    %s18 = sphi 0, %s25
    %s19 = sphi 0, %s17
    %s20 = sphi 0, %s18
    %s21 = sphi 0, %s19
    %s22 = sphi 0, %s20
    %s38 = sphi 0, %s40
    %s41 = sphi 0, %s38
    %s42 = sphi 0, %s41
    %s58 = sphi 0, %s42
    %s70 = sphi 0, %s72
    %s73 = sphi 0, %s70
    %s74 = sphi 0, %s73
    %s90 = sphi 0, %s74
    %s96 = sphi 0, %s98
    %s99 = sphi 0, %s96
    %s100 = sphi 0, %s99
    %s116 = sphi 0, %s100
  $region4: #{iou_loss.1} parent=0 // loop_header_branch
    %13 = sbr.rel (%p11) target = $region8
  $region5: #{iou_loss.1} parent=0 // loop_body
    %s15 = ssub.s32 %s10, 1
    %s16 = ssub.s32 %s10, 2
    %s23 = sadd.s32 1, %s18
    %p24 = scmp.ge.s32.totalorder %s23, 1
    %s25 = scalar_select %p24, 0, %s23
    %s26 = sadd.s32 1, %s17
    %s27 = scalar_select %p24, %s26, %s17
    %p28 = scmp.ge.s32.totalorder %s27, 2
    %s29 = scalar_select %p28, 0, %s27
    %s30 = sadd.s32 %s17, %s18
    %p31 = scmp.lt.s32.totalorder %s30, 0
    %s32 = scalar_select %p31, %s30, 0
    %s33 = sadd.s32 %s29, %s25
    %p34 = scmp.lt.s32.totalorder %s33, 0
    %s35 = scalar_select %p34, %s33, 0
    %s36 = ssub.s32 %s32, %s35
    %p37 = scmp.eq.s32.totalorder %s36, 0
    %s39 = sadd.s32 %s38, 1
    %s40 = scalar_select %p37, %s38, %s39
    %p43 = pneg %p37
    %p44 = scmp.eq.s32.totalorder %s10, 1
    %p45 = por %p43, %p44
    %p46 = scmp.ne.s32.totalorder %s38, %s41
    %p47 = scmp.eq.s32.totalorder %s10, 0
    %p48 = por %p46, %p47
    %p49 = scmp.ne.s32.totalorder %s38, %s41
    %p50 = scmp.eq.s32.totalorder %s15, 1
    %p51 = por %p49, %p50
    %p52 = scmp.ne.s32.totalorder %s41, %s42
    %p53 = scmp.eq.s32.totalorder %s15, 0
    %p54 = por %p52, %p53
    %p55 = scmp.ne.s32.totalorder %s41, %s42
    %p56 = scmp.eq.s32.totalorder %s16, 1
    %p57 = por %p55, %p56
    %p59 = scmp.ne.s32.totalorder %s42, %s58
    %p60 = scmp.eq.s32.totalorder %s16, 0
    %p61 = por %p59, %p60
    %s62 = sadd.s32 %s17, %s18
    %p63 = scmp.lt.s32.totalorder %s62, 0
    %s64 = scalar_select %p63, %s62, 0
    %s65 = sadd.s32 %s29, %s25
    %p66 = scmp.lt.s32.totalorder %s65, 0
    %s67 = scalar_select %p66, %s65, 0
    %s68 = ssub.s32 %s64, %s67
    %p69 = scmp.eq.s32.totalorder %s68, 0
    %s71 = sadd.s32 %s70, 1
    %s72 = scalar_select %p69, %s70, %s71
    %p75 = pneg %p69
    %p76 = scmp.eq.s32.totalorder %s10, 1
    %p77 = por %p75, %p76
    %p78 = scmp.ne.s32.totalorder %s70, %s73
    %p79 = scmp.eq.s32.totalorder %s10, 0
    %p80 = por %p78, %p79
    %p81 = scmp.ne.s32.totalorder %s70, %s73
    %p82 = scmp.eq.s32.totalorder %s15, 1
    %p83 = por %p81, %p82
    %p84 = scmp.ne.s32.totalorder %s73, %s74
    %p85 = scmp.eq.s32.totalorder %s15, 0
    %p86 = por %p84, %p85
    %p87 = scmp.ne.s32.totalorder %s73, %s74
    %p88 = scmp.eq.s32.totalorder %s16, 1
    %p89 = por %p87, %p88
    %p91 = scmp.ne.s32.totalorder %s74, %s90
    %p92 = scmp.eq.s32.totalorder %s16, 0
    %p93 = por %p91, %p92
    %s94 = ssub.s32 %s17, %s29
    %p95 = scmp.eq.s32.totalorder %s94, 0
    %s97 = sadd.s32 %s96, 1
    %s98 = scalar_select %p95, %s96, %s97
    %p101 = pneg %p95
    %p102 = scmp.eq.s32.totalorder %s10, 1
    %p103 = por %p101, %p102
    %p104 = scmp.ne.s32.totalorder %s96, %s99
    %p105 = scmp.eq.s32.totalorder %s10, 0
    %p106 = por %p104, %p105
    %p107 = scmp.ne.s32.totalorder %s96, %s99
    %p108 = scmp.eq.s32.totalorder %s15, 1
    %p109 = por %p107, %p108
    %p110 = scmp.ne.s32.totalorder %s99, %s100
    %p111 = scmp.eq.s32.totalorder %s15, 0
    %p112 = por %p110, %p111
    %p113 = scmp.ne.s32.totalorder %s99, %s100
    %p114 = scmp.eq.s32.totalorder %s16, 1
    %p115 = por %p113, %p114
    %p117 = scmp.ne.s32.totalorder %s100, %s116
    %p118 = scmp.eq.s32.totalorder %s16, 0
    %p119 = por %p117, %p118
    %p120 = scmp.le.s32.totalorder 1, %s10
    %p121 = scmp.lt.s32.totalorder %s10, 3
    %p122 = pnand %p120, %p121
    %p123 = pneg %p122
    // Predicated region
    $region9: #{iou_loss.1} parent=5 // pred_check
      _
    $region10: #{iou_loss.1} parent=5 // pred_check_branch
      %125 = sbr.rel (%p122) target = $region12
    $region11: #{iou_loss.1} parent=5 // pred_region
      %s126 = ssub.s32 %s10, 1
    $region12: #{iou_loss.1} parent=5 // pred_fallthru
      _
    %p127 = scmp.lt.s32.totalorder %s10, 2
    // Predicated region
    $region13: #{iou_loss.1} parent=5 // pred_check
      %p128 = pneg %p127
    $region14: #{iou_loss.1} parent=5 // pred_check_branch
      %130 = sbr.rel (%p128) target = $region16
    $region15: #{iou_loss.1} parent=5 // pred_region
      // Predicated region
      $region17: #{iou_loss.1} parent=15 // pred_check
        %p131 = pneg %p48
      $region18: #{iou_loss.1} parent=15 // pred_check_branch
        %133 = sbr.rel (%p131) target = $region20
      $region19: #{iou_loss.1} parent=15 // pred_region
        %s134 = sadd.s32 %s17, %s18
        %p135 = scmp.lt.s32.totalorder %s134, 0
        %s136 = scalar_select %p135, %s134, 0
        %p137 = scmp.lt.s32.totalorder %s136, 0
        %s138 = scalar_select %p137, %s136, 0
        %s139 = smul.addr %s138, 8
        %s140 = scalar_lea.vmem %s1, %s139
        %s141 = sadd.s32 %s17, %s18
        %p142 = scmp.lt.s32.totalorder %s141, 0
        %s143 = scalar_select %p142, %s141, 0
      $region20: #{iou_loss.1} parent=15 // pred_fallthru
        _
      // Predicated region
      $region21: #{iou_loss.1} parent=15 // pred_check
        %p144 = pneg %p80
      $region22: #{iou_loss.1} parent=15 // pred_check_branch
        %146 = sbr.rel (%p144) target = $region24
      $region23: #{iou_loss.1} parent=15 // pred_region
        %s147 = sadd.s32 %s17, %s18
        %p148 = scmp.lt.s32.totalorder %s147, 0
        %s149 = scalar_select %p148, %s147, 0
        %p150 = scmp.lt.s32.totalorder %s149, 0
        %s151 = scalar_select %p150, %s149, 0
        %s152 = smul.addr %s151, 8
        %s153 = scalar_lea.vmem %s2, %s152
        %s154 = sadd.s32 %s17, %s18
        %p155 = scmp.lt.s32.totalorder %s154, 0
        %s156 = scalar_select %p155, %s154, 0
      $region24: #{iou_loss.1} parent=15 // pred_fallthru
        _
    $region16: #{iou_loss.1} parent=5 // pred_fallthru
      _
    %p157 = scmp.le.s32.totalorder 1, %s10
    %p158 = scmp.lt.s32.totalorder %s10, 3
    %p159 = pnand %p157, %p158
    %p160 = pneg %p159
    // Predicated region
    $region25: #{iou_loss.1} parent=5 // pred_check
      _
    $region26: #{iou_loss.1} parent=5 // pred_check_branch
      %162 = sbr.rel (%p159) target = $region28
    $region27: #{iou_loss.1} parent=5 // pred_region
      %s163 = ssub.s32 %s10, 1
      %s164 = sadd.s32 %s19, %s20
      %p165 = scmp.lt.s32.totalorder %s164, 0
      %s166 = scalar_select %p165, %s164, 0
      %p167 = scmp.lt.s32.totalorder %s166, 0
      %s168 = scalar_select %p167, %s166, 0
      %s169 = smul.addr %s168, 8
      %s170 = scalar_lea.vmem %s1, %s169
      %p171 = pneg %p54
      %p172 = pneg %p51
      %s173 = sadd.s32 %s19, %s20
      %p174 = scmp.lt.s32.totalorder %s173, 0
      %s175 = scalar_select %p174, %s173, 0
      %p176 = scmp.lt.s32.totalorder %s175, 0
      %s177 = scalar_select %p176, %s175, 0
      %s178 = smul.addr %s177, 8
      %s179 = scalar_lea.vmem %s2, %s178
      %p180 = pneg %p86
      %p181 = pneg %p83
      %p182 = pneg %p112
      %p183 = pneg %p109
      %p184 = scmp.lt.s32.totalorder %s19, 1
      %s185 = scalar_select %p184, %s19, 1
      %s186 = smul.addr %s185, 8
      %s187 = scalar_lea.vmem %s3, %s186
      %s188 = sadd.s32 %s19, %s20
      %p189 = scmp.lt.s32.totalorder %s188, 0
      %s190 = scalar_select %p189, %s188, 0
      %p191 = scmp.lt.s32.totalorder %s190, 0
      %s192 = scalar_select %p191, %s190, 0
      %s193 = smul.addr %s192, 8
      %s194 = scalar_lea.vmem %s1, %s193
      %s195 = sadd.s32 %s19, %s20
      %p196 = scmp.lt.s32.totalorder %s195, 0
      %s197 = scalar_select %p196, %s195, 0
      %s198 = sadd.s32 %s19, %s20
      %p199 = scmp.lt.s32.totalorder %s198, 0
      %s200 = scalar_select %p199, %s198, 0
      %p201 = scmp.lt.s32.totalorder %s200, 0
      %s202 = scalar_select %p201, %s200, 0
      %s203 = smul.addr %s202, 8
      %s204 = scalar_lea.vmem %s2, %s203
      %s205 = sadd.s32 %s19, %s20
      %p206 = scmp.lt.s32.totalorder %s205, 0
      %s207 = scalar_select %p206, %s205, 0
      %p208 = scmp.lt.s32.totalorder %s19, 1
      %s209 = scalar_select %p208, %s19, 1
      %s210 = smul.addr %s209, 8
      %s211 = scalar_lea.vmem %s3, %s210
      %p212 = scmp.eq.s32.totalorder %s20, 0
      // Predicated region
      $region29: #{iou_loss.1} parent=27 // pred_check
        %p213 = pneg %p212
      $region30: #{iou_loss.1} parent=27 // pred_check_branch
        %215 = sbr.rel (%p213) target = $region32
      $region31: #{iou_loss.1} parent=27 // pred_region
        %216 = vst [vmem:[%s211] sm:$0xff] 0.0
      $region32: #{iou_loss.1} parent=27 // pred_fallthru
        _
      %v217 = vld [vmem:[%s194] sm:$0xff]
      %v218 = vld [vmem:[%s204] sm:$0xff]
      %v219 = vlaneseq
      %v220 = vand.u32 %v219, 127
      %v221 = vlaneseq
      %v222 = vshrl.u32 %v221, 7
      %v223 = vand.u32 %v220, 3
      %vm224 = vcmp.lt.s32.totalorder %v223, 2
      %v225 = vmax.f32 %v217, %v218
      %v226 = vmin.f32 %v217, %v218
      %v227 = vsel %vm224, %v225, %v226
      %228 = vrot.lane.b32.xlu0 %v227, 126
      %v229 = vpop.permute.xlu0 %228
      %v230 = vsub.f32 %v229, %v227
      %v231 = vmax.f32 %v230, 0.0
      %232 = vrot.lane.b32.xlu0 %v231, 127
      %v233 = vpop.permute.xlu0 %232
      %v234 = vmul.f32 %v231, %v233
      %235 = vrot.lane.b32.xlu0 %v217, 126
      %v236 = vpop.permute.xlu0 %235
      %v237 = vsub.f32 %v236, %v217
      %238 = vrot.lane.b32.xlu0 %v237, 127
      %v239 = vpop.permute.xlu0 %238
      %v240 = vmul.f32 %v237, %v239
      %241 = vrot.lane.b32.xlu0 %v218, 126
      %v242 = vpop.permute.xlu0 %241
      %v243 = vsub.f32 %v242, %v218
      %244 = vrot.lane.b32.xlu0 %v243, 127
      %v245 = vpop.permute.xlu0 %244
      %v246 = vmul.f32 %v243, %v245
      %v247 = vadd.f32 %v240, %v246
      %v248 = vsub.f32 %v247, %v234
      %vm249 = vcmp.gt.f32.partialorder %v248, 0.0
      %v250 = vsel %vm249, %v248, 1.0
      %v251 = vrcp.pop %v250
      %v252 = vmul.f32 %v234, %v251
      %s253 = sadd.s32 %s19, %s20
      %s254 = smul.u32 %s253, 8
      %v255 = vstv %s254
      %v256 = vadd.s32 %v255, %v222
      %v257 = vmul.u32 %v256, 32
      %v258 = vshra.s32 %v220, 2
      %v259 = vadd.s32 %v257, %v258
      %vm260 = vcmp.eq.s32.totalorder %v223, 0
      %s261 = sld [smem:[#allocation3]]
      %v262 = vstv %s261
      %vm263 = vcmp.lt.s32.totalorder %v259, %v262
      %vm264 = vmand %vm260, %vm263
      %v265 = vsel %vm264, %v252, 0.0
      %v266 = vld [vmem:[%s211] sm:$0xff]
      %v267 = vadd.f32 %v265, 0.0
      %v268 = vadd.f32 %v266, %v267
      %269 = vst [vmem:[%s211] sm:$0xff] %v268
      %p270 = scmp.lt.s32.totalorder %s19, 1
      %s271 = scalar_select %p270, %s19, 1
      %s272 = smul.addr %s271, 8
      %s273 = scalar_lea.vmem %s3, %s272
      // Predicated region
      $region33: #{iou_loss.1} parent=27 // pred_check
        %p274 = pneg %p109
      $region34: #{iou_loss.1} parent=27 // pred_check_branch
        %276 = sbr.rel (%p274) target = $region36
      $region35: #{iou_loss.1} parent=27 // pred_region
        _
      $region36: #{iou_loss.1} parent=27 // pred_fallthru
        _
    $region28: #{iou_loss.1} parent=5 // pred_fallthru
      _
    %p277 = scmp.le.s32.totalorder 2, %s10
    // Predicated region
    $region37: #{iou_loss.1} parent=5 // pred_check
      %p278 = pneg %p277
    $region38: #{iou_loss.1} parent=5 // pred_check_branch
      %280 = sbr.rel (%p278) target = $region40
    $region39: #{iou_loss.1} parent=5 // pred_region
      %s281 = ssub.s32 %s10, 2
      // Predicated region
      $region41: #{iou_loss.1} parent=39 // pred_check
        %p282 = pneg %p115
      $region42: #{iou_loss.1} parent=39 // pred_check_branch
        %284 = sbr.rel (%p282) target = $region44
      $region43: #{iou_loss.1} parent=39 // pred_region
        %p285 = scmp.lt.s32.totalorder %s21, 1
        %s286 = scalar_select %p285, %s21, 1
        %s287 = smul.addr %s286, 8
        %s288 = scalar_lea.vmem %s3, %s287
      $region44: #{iou_loss.1} parent=39 // pred_fallthru
        _
    $region40: #{iou_loss.1} parent=5 // pred_fallthru
      _
  $region6: #{iou_loss.1} parent=0 // loop_footer
    %s14 = sadd.s32 1, %s10
  $region7: #{iou_loss.1} parent=0 // loop_footer_branch
    %9 = sbr.rel target = $region3
  $region8: #{iou_loss.1} parent=0 // loop_exit
    _

</llo_original>
